<compile_context>
chip_gen: v5e
topology: v5e:2x2
jax: 0.10.0
libtpu: 0.0.40
codegen_flags: <defaults>
</compile_context>

<pallas_src>
import numpy as np

import jax
import jax.numpy as jnp
from jax import lax
from jax.experimental import pallas as pl
from jax.experimental.pallas import tpu as pltpu


LANE = 128
SECTION_ALIGN = 16  # bf16 packs 2 rows per 32-bit sublane -> 16-row sections


def _round_up(x, m):
    return ((x + m - 1) // m) * m


# ----------------------------------------------------------------------------
# One-time parameter packing (hoisted out of the forward path).
# q*_params: list of (w, b) with w shaped (in_features, out_features).
# ----------------------------------------------------------------------------
def pack_qnetwork_params(q1_params, q2_params, num_inputs, num_actions):
    num_layers = len(q1_params)
    assert len(q2_params) == num_layers
    assert num_layers >= 2, "expects at least one hidden layer (SAC default)"

    out_dims = [np.asarray(w).shape[1] for (w, _) in q1_params]
    lane = max(LANE, _round_up(2 * max(out_dims), LANE))
    k_dim = num_inputs + num_actions

    sections = []      # (row_offset, np.ndarray of width `lane`)
    rows_used = 0

    def add(arr):
        nonlocal rows_used
        off = rows_used
        sections.append((off, arr))
        rows_used = _round_up(off + arr.shape[0], SECTION_ALIGN)
        return off

    def pad_cols(a):
        out = np.zeros((a.shape[0], lane), np.float32)
        out[:, : a.shape[1]] = a
        return out

    # --- layer 0: q1|q2 fused along output lanes; state+action rows are
    # contiguous so the kernel runs ONE K=(NI+NA) matmul.
    w1_0 = np.asarray(q1_params[0][0], np.float32)
    w2_0 = np.asarray(q2_params[0][0], np.float32)
    b1_0 = np.asarray(q1_params[0][1], np.float32)
    b2_0 = np.asarray(q2_params[0][1], np.float32)
    off_w0 = add(pad_cols(np.concatenate([w1_0, w2_0], axis=1)))     # (K, 2h0)
    off_b0 = add(pad_cols(np.concatenate([b1_0, b2_0])[None, :]))    # (1, 2h0)

    # --- hidden layers 1..L-2: block-diagonal fusion padded to (lane, lane).
    middle_offsets = []
    for i in range(1, num_layers - 1):
        w1 = np.asarray(q1_params[i][0], np.float32)
        w2 = np.asarray(q2_params[i][0], np.float32)
        b1 = np.asarray(q1_params[i][1], np.float32)
        b2 = np.asarray(q2_params[i][1], np.float32)
        d_in, d_out = w1.shape
        wf = np.zeros((lane, lane), np.float32)
        wf[:d_in, :d_out] = w1
        wf[d_in:2 * d_in, d_out:2 * d_out] = w2
        bf = np.zeros((1, lane), np.float32)
        bf[0, :d_out] = b1
        bf[0, d_out:2 * d_out] = b2
        middle_offsets.append((add(wf), add(bf)))

    # --- last layer stored TRANSPOSED (2, lane): contracted against the lane
    # axis of the hidden activation -> (2, B_tile) output (64x less writeback
    # than a padded (B, 128) store once the kernel is HBM-bound).
    w1_l = np.asarray(q1_params[-1][0], np.float32)      # (h_last, 1)
    w2_l = np.asarray(q2_params[-1][0], np.float32)
    b1_l = np.asarray(q1_params[-1][1], np.float32)
    b2_l = np.asarray(q2_params[-1][1], np.float32)
    h_last = w1_l.shape[0]
    wT = np.zeros((2, lane), np.float32)
    wT[0, :h_last] = w1_l[:, 0]
    wT[1, h_last:2 * h_last] = w2_l[:, 0]
    bT = np.zeros((2, lane), np.float32)
    bT[0, 0] = b1_l[0]
    bT[1, 0] = b2_l[0]
    off_wT = add(wT)
    off_bT = add(bT)

    total_rows = _round_up(rows_used, SECTION_ALIGN)
    packed = np.zeros((total_rows, lane), np.float32)
    for off, arr in sections:
        packed[off:off + arr.shape[0], :] = arr

    meta = dict(
        num_layers=num_layers, k_dim=k_dim, lane=lane, rows=total_rows,
        off_w0=off_w0, off_b0=off_b0, middle_offsets=tuple(middle_offsets),
        off_wT=off_wT, off_bT=off_bT,
    )
    # bf16 slab: halves the dominant param DMA and keeps the MXU on the
    # single-pass bf16 path. (If quantizing further, target fp8 — v7x MXU has
    # no int8.)
    return jnp.asarray(packed, dtype=jnp.bfloat16), meta


# ----------------------------------------------------------------------------
# Kernel: fused twin-Q MLP, 3 matmuls total, f32 accumulation throughout.
# ----------------------------------------------------------------------------
def make_qnetwork_kernel(meta):
    k_dim = meta["k_dim"]
    lane = meta["lane"]
    off_w0 = meta["off_w0"]
    off_b0 = meta["off_b0"]
    middle_offsets = meta["middle_offsets"]
    off_wT = meta["off_wT"]
    off_bT = meta["off_bT"]

    def kernel(xu_ref, p_ref, out_ref):
        # Activations feed the MXU in bf16; accumulation, bias adds and ReLU
        # stay in f32 (v5e VPU has no bf16 ALUs).
        x = xu_ref[...].astype(jnp.bfloat16)                      # (Bt, K)

        # Layer 0: single K=(NI+NA) matmul, q1|q2 fused along output lanes.
        w0 = p_ref[off_w0:off_w0 + k_dim, :]                      # (K, lane)
        b0 = p_ref[off_b0:off_b0 + 1, :].astype(jnp.float32)      # (1, lane)
        h = jnp.dot(x, w0, preferred_element_type=jnp.float32) + b0
        h = jnp.maximum(h, 0.0)

        # Hidden layers: block-diagonal fused weights.
        for off_w, off_b in middle_offsets:
            w = p_ref[off_w:off_w + lane, :]                      # (lane, lane)
            b = p_ref[off_b:off_b + 1, :].astype(jnp.float32)     # (1, lane)
            h = jnp.dot(h.astype(jnp.bfloat16), w,
                        preferred_element_type=jnp.float32) + b
            h = jnp.maximum(h, 0.0)

        # Last layer, transposed: (2, lane) x (Bt, lane)^T -> (2, Bt).
        w_t = p_ref[off_wT:off_wT + 2, :]                         # (2, lane)
        b_t = p_ref[off_bT:off_bT + 2, 0:1].astype(jnp.float32)   # (2, 1)
        q_t = lax.dot_general(
            w_t, h.astype(jnp.bfloat16),
            dimension_numbers=(((1,), (1,)), ((), ())),
            preferred_element_type=jnp.float32) + b_t
        out_ref[...] = q_t                                        # (2, Bt)

    return kernel


# ----------------------------------------------------------------------------
# Forward factory: kernel + pallas_call built at trace time only, whole
# wrapper jitted (concat / casts / output slicing all fuse into one dispatch).
# ----------------------------------------------------------------------------
def make_qnetwork_forward(meta, *, batch_tile=256, grid_batch_threshold=256):
    kernel = make_qnetwork_kernel(meta)
    k_dim = meta["k_dim"]
    rows = meta["rows"]
    lane = meta["lane"]
    vmem = pl.BlockSpec(memory_space=pltpu.MemorySpace.VMEM)

    @jax.jit
    def forward(state, action, packed):
        batch = state.shape[0]
        xu = jnp.concatenate(
            [state.astype(jnp.bfloat16), action.astype(jnp.bfloat16)], axis=1)

        if batch < grid_batch_threshold:
            # Latency path: whole batch + param slab resident in VMEM, no grid.
            out = pl.pallas_call(
                kernel,
                out_shape=jax.ShapeDtypeStruct((2, batch), jnp.float32),
                in_specs=[vmem, vmem],
                out_specs=vmem,
            )(xu, packed)
        else:
            # Throughput path: batch grid marked "parallel" (both v7x
            # TensorCores); param slab block index is constant so it stays
            # VMEM-resident across grid steps.
            tb = batch_tile
            padded = _round_up(batch, tb)
            if padded != batch:
                xu = jnp.pad(xu, ((0, padded - batch), (0, 0)))
            out = pl.pallas_call(
                kernel,
                out_shape=jax.ShapeDtypeStruct((2, padded), jnp.float32),
                grid_spec=pltpu.PrefetchScalarGridSpec(
                    num_scalar_prefetch=0,
                    grid=(padded // tb,),
                    in_specs=[
                        pl.BlockSpec((tb, k_dim), lambda i: (i, 0)),
                        pl.BlockSpec((rows, lane), lambda i: (0, 0)),
                    ],
                    out_specs=pl.BlockSpec((2, tb), lambda i: (0, i)),
                ),
                compiler_params=pltpu.CompilerParams(
                    dimension_semantics=("parallel",)),
            )(xu, packed)
            out = out[:, :batch]

        return out[0, :, None], out[1, :, None]   # q1, q2 of shape (B, 1)

    return forward


# ----------------------------------------------------------------------------
# Deterministic parameter init (matches weights_init_: xavier_uniform gain=1,
# bias = 0) and a pure-JAX f32 reference for checking.
# ----------------------------------------------------------------------------
def xavier_uniform(key, fan_in, fan_out):
    bound = (6.0 / (fan_in + fan_out)) ** 0.5
    return jax.random.uniform(key, (fan_in, fan_out), jnp.float32, -bound, bound)


def init_mlp_params(key, input_dim, hidden_dims):
    dims = [input_dim] + list(hidden_dims) + [1]
    params = []
    for i in range(len(dims) - 1):
        key, sub = jax.random.split(key)
        w = xavier_uniform(sub, dims[i], dims[i + 1])
        b = jnp.zeros((dims[i + 1],), jnp.float32)
        params.append((w, b))
    return key, params


def qnetwork_ref(state, action, q1_params, q2_params):
    xu = jnp.concatenate([state, action], axis=1)

    def mlp(params):
        h = xu
        for i, (w, b) in enumerate(params):
            h = h @ w + b
            if i < len(params) - 1:
                h = jnp.maximum(h, 0.0)
        return h

    return mlp(q1_params), mlp(q2_params)


if __name__ == "__main__":
    num_inputs = 12
    num_actions = 4
    hidden_dims = (32, 32)

    key = jax.random.PRNGKey(0)
    key, q1_params = init_mlp_params(key, num_inputs + num_actions, hidden_dims)
    key, q2_params = init_mlp_params(key, num_inputs + num_actions, hidden_dims)

    # One-time packing + jitted forward construction (lives outside the
    # per-step path in a real SAC training loop).
    packed, meta = pack_qnetwork_params(q1_params, q2_params,
                                        num_inputs, num_actions)
    qnetwork_forward = make_qnetwork_forward(meta)

    def run_and_check(batch, key):
        key, ks, ka = jax.random.split(key, 3)
        state = jax.random.normal(ks, (batch, num_inputs), jnp.float32)
        action = jax.random.normal(ka, (batch, num_actions), jnp.float32)
        q1, q2 = qnetwork_forward(state, action, packed)
        q1 = jax.block_until_ready(q1)
        q2 = jax.block_until_ready(q2)
        r1, r2 = qnetwork_ref(state, action, q1_params, q2_params)
        assert q1.shape == (batch, 1) and q2.shape == (batch, 1)
        for q, r in ((q1, r1), (q2, r2)):
            err = np.abs(np.asarray(q, np.float32) - np.asarray(r, np.float32))
            # bf16 weights/activations (f32 accumulation) -> loosened tolerance.
            assert float(err.max()) < 1e-1, ("max err", float(err.max()))
            assert float(err.mean()) < 2e-2, ("mean err", float(err.mean()))
        return key

    key = run_and_check(8, key)     # small batch: gridless latency path
    key = run_and_check(512, key)   # larger batch: gridded "parallel" path
    print("KERNEL_OK")
</pallas_src>

<mosaic_0001>
module attributes {stable_mosaic.version = 11 : i64} {
  func.func @kernel(%arg0: memref<8x16xbf16, #tpu.memory_space<vmem>>, %arg1: memref<208x128xbf16, #tpu.memory_space<vmem>>, %arg2: memref<2x8xf32, #tpu.memory_space<vmem>>) attributes {dimension_semantics = [], scalar_prefetch = 0 : i64, scratch_operands = 0 : i64, tpu.core_type = #tpu.core_type<tc>} {
    %c0 = arith.constant 0 : index
    %c0_0 = arith.constant 0 : index
    %0 = vector.load %arg0[%c0, %c0_0] : memref<8x16xbf16, #tpu.memory_space<vmem>>, vector<8x16xbf16>
    %c0_1 = arith.constant 0 : index
    %c0_2 = arith.constant 0 : index
    %1 = vector.load %arg1[%c0_1, %c0_2] : memref<208x128xbf16, #tpu.memory_space<vmem>>, vector<16x128xbf16>
    %c16 = arith.constant 16 : index
    %c0_3 = arith.constant 0 : index
    %2 = vector.load %arg1[%c16, %c0_3] : memref<208x128xbf16, #tpu.memory_space<vmem>>, vector<1x128xbf16>
    %3 = arith.extf %2 : vector<1x128xbf16> to vector<1x128xf32>
    %cst = arith.constant dense<0.000000e+00> : vector<8x128xf32>
    %4 = tpu.matmul %0, %1, %cst {dimension_numbers = #tpu.dot_dimension_numbers<[1], [0], [0], [1], [0, 0, 1, 1], [], []>} : vector<8x16xbf16>, vector<16x128xbf16>, vector<8x128xf32> -> vector<8x128xf32>
    %5 = vector.broadcast %3 : vector<1x128xf32> to vector<8x128xf32>
    %6 = arith.addf %4, %5 : vector<8x128xf32>
    %cst_4 = arith.constant 0.000000e+00 : f32
    %7 = vector.broadcast %cst_4 : f32 to vector<8x128xf32>
    %8 = arith.maximumf %6, %7 : vector<8x128xf32>
    %c32 = arith.constant 32 : index
    %c0_5 = arith.constant 0 : index
    %9 = vector.load %arg1[%c32, %c0_5] : memref<208x128xbf16, #tpu.memory_space<vmem>>, vector<128x128xbf16>
    %c160 = arith.constant 160 : index
    %c0_6 = arith.constant 0 : index
    %10 = vector.load %arg1[%c160, %c0_6] : memref<208x128xbf16, #tpu.memory_space<vmem>>, vector<1x128xbf16>
    %11 = arith.extf %10 : vector<1x128xbf16> to vector<1x128xf32>
    %12 = arith.truncf %8 : vector<8x128xf32> to vector<8x128xbf16>
    %cst_7 = arith.constant dense<0.000000e+00> : vector<8x128xf32>
    %13 = tpu.matmul %12, %9, %cst_7 {dimension_numbers = #tpu.dot_dimension_numbers<[1], [0], [0], [1], [0, 0, 1, 1], [], []>} : vector<8x128xbf16>, vector<128x128xbf16>, vector<8x128xf32> -> vector<8x128xf32>
    %14 = vector.broadcast %11 : vector<1x128xf32> to vector<8x128xf32>
    %15 = arith.addf %13, %14 : vector<8x128xf32>
    %cst_8 = arith.constant 0.000000e+00 : f32
    %16 = vector.broadcast %cst_8 : f32 to vector<8x128xf32>
    %17 = arith.maximumf %15, %16 : vector<8x128xf32>
    %c176 = arith.constant 176 : index
    %c0_9 = arith.constant 0 : index
    %18 = vector.load %arg1[%c176, %c0_9] : memref<208x128xbf16, #tpu.memory_space<vmem>>, vector<2x128xbf16>
    %c192 = arith.constant 192 : index
    %c0_10 = arith.constant 0 : index
    %19 = vector.load %arg1[%c192, %c0_10] : memref<208x128xbf16, #tpu.memory_space<vmem>>, vector<2x1xbf16>
    %20 = arith.extf %19 : vector<2x1xbf16> to vector<2x1xf32>
    %21 = arith.truncf %17 : vector<8x128xf32> to vector<8x128xbf16>
    %cst_11 = arith.constant dense<0.000000e+00> : vector<2x8xf32>
    %22 = tpu.matmul %18, %21, %cst_11 {dimension_numbers = #tpu.dot_dimension_numbers<[1], [1], [0], [0], [0, 0, 1, 0], [], []>} : vector<2x128xbf16>, vector<8x128xbf16>, vector<2x8xf32> -> vector<2x8xf32>
    %23 = vector.broadcast %20 : vector<2x1xf32> to vector<2x8xf32>
    %24 = arith.addf %22, %23 : vector<2x8xf32>
    %c0_12 = arith.constant 0 : index
    %c0_13 = arith.constant 0 : index
    %25 = vector.load %arg2[%c0_12, %c0_13] : memref<2x8xf32, #tpu.memory_space<vmem>>, vector<2x8xf32>
    tpu.vector_store %arg2[%c0_12, %c0_13], %24 {strides = array<i32>} : memref<2x8xf32, #tpu.memory_space<vmem>>, vector<2x8xf32>,
    return
  }
}

</mosaic_0001>

<llo_original>
// kernel: forward.1
$region0: #{forward.1}
  #allocation0 [shape = 'u32[]', space=smem, size = 0x4, offset = 0x4, fixed_abs, tag = 'smem constant byte address 0x4 - core index']
  #allocation1 [shape = 'u32[72,128]{1,0:T(1,128)}', space=vmem, size = 0x9000, scoped, tag = 'internal scratch']
  %s0 = inlined_call_operand.vmem [shape: bf16[8,16], index: 0, kind: input, shape index: {}]
  %s1 = inlined_call_operand.hbm [shape: bf16[208,128], index: 1, kind: input, shape index: {}]
  %s2 = inlined_call_operand.vmem [shape: f32[2,8], index: 2, kind: output, shape index: {}]
  %s3 = sld [smem:[#allocation0]]
  $region22: #{forward.1} parent=0
    _
  %s5 = ssub.s32 1, %s3
  %s6 = scalar_select 0, %s5, %s3
  $region1: #{forward.1} parent=0
    #allocation2 [shape = 'u8[53248]{0}', space=vmem, size = 0xd000, scoped, tag = 'input window, operand 1, single buffered']
    #allocation3 [shape = 's32[1]{0}', space=sflag, size = 0x4, scoped, tag = 'scoped memory for forward.1']
    %7 = vsyncpa [#allocation3], 0
    // Predicated region
    $region2: #{forward.1} parent=1 // pred_check
      _
    $region3: #{forward.1} parent=1 // pred_check_branch
      %9 = sbr.rel (0) target = $region5
    $region4: #{forward.1} parent=1 // pred_region
      _
    $region5: #{forward.1} parent=1 // pred_fallthru
      _
    // Predicated region
    $region6: #{forward.1} parent=1 // pred_check
      _
    $region7: #{forward.1} parent=1 // pred_check_branch
      %11 = sbr.rel (0) target = $region9
    $region8: #{forward.1} parent=1 // pred_region
      %13 = vsyncadd [#allocation3], 0
      %s14 = sshll.u32 %s1, 4
      %s15 = int_to_ptr.hbm [resolvable:$true] %s14
      %s16 = sshll.u32 [#allocation2], 4
      %s17 = int_to_ptr.vmem [resolvable:$true] %s16
      %22 = dma.hbm_to_vmem [thread:$0]  %s15, 1664, %s17, [#allocation3], 64, 64, 4
    $region9: #{forward.1} parent=1 // pred_fallthru
      _
    // Predicated region
    $region10: #{forward.1} parent=1 // pred_check
      _
    $region11: #{forward.1} parent=1 // pred_check_branch
      %24 = sbr.rel (0) target = $region13
    $region12: #{forward.1} parent=1 // pred_region
      %26 = dma.done [#allocation3], 1664
    $region13: #{forward.1} parent=1 // pred_fallthru
      _
    %v28 = vld [vmem:[%s0] sm:$0xf]
    %v29 = vld [vmem:[#allocation2] sm:$0xf]
    %v30 = vld [vmem:[#allocation2 + $0x4] sm:$0xf]
    %v31 = vld [vmem:[#allocation2 + $0x8] sm:$0x1]
    %v32 = vunpack.c.l.bf16 %v31
    %v33 = vperm.slane %v32, 0
    %v36 = vunpack.c.l.b16 %v29
    %v37 = vunpack.c.l.b16 %v30
    %v38 = vpack.c.b16 %v37, %v36
    %vm40 = vcmask 130048
    %v42 = vsel %vm40, %v28, 0
    %44 = vmatpush.bf16.msra.mxu0 0
    %45 = vmatpush.bf16.msra.mxu0 0
    %46 = vmatpush.bf16.msra.mxu0 0
    %47 = vmatpush.bf16.msra.mxu0 0
    %48 = vmatpush.bf16.msra.mxu0 0
    %49 = vmatpush.bf16.msra.mxu0 0
    %50 = vmatpush.bf16.msra.mxu0 0
    %51 = vmatpush.bf16.msra.mxu0 %v38
    %52 = vmatmul.bf16.gmra.mxu0 %v42
    %v53 = vpop.f32.mrf.mxu0
    %v54 = vadd.f32 %v33, %v53
    %v55 = vpop.f32.mrf.mxu0
    %56 = vdwg.mxu0
    %v57 = vmax.f32 %v54, 0.0
    %v58 = vld [vmem:[#allocation2 + $0x10] sm:$0xf]
    %v59 = vld [vmem:[#allocation2 + $0x14] sm:$0xf]
    %v60 = vld [vmem:[#allocation2 + $0x18] sm:$0xf]
    %v61 = vld [vmem:[#allocation2 + $0x1c] sm:$0xf]
    %v62 = vld [vmem:[#allocation2 + $0x20] sm:$0xf]
    %v63 = vld [vmem:[#allocation2 + $0x24] sm:$0xf]
    %v64 = vld [vmem:[#allocation2 + $0x28] sm:$0xf]
    %v65 = vld [vmem:[#allocation2 + $0x2c] sm:$0xf]
    %v66 = vld [vmem:[#allocation2 + $0x30] sm:$0xf]
    %v67 = vld [vmem:[#allocation2 + $0x34] sm:$0xf]
    %v68 = vld [vmem:[#allocation2 + $0x38] sm:$0xf]
    %v69 = vld [vmem:[#allocation2 + $0x3c] sm:$0xf]
    %v70 = vld [vmem:[#allocation2 + $0x40] sm:$0xf]
    %v71 = vld [vmem:[#allocation2 + $0x44] sm:$0xf]
    %v72 = vld [vmem:[#allocation2 + $0x48] sm:$0xf]
    %v73 = vld [vmem:[#allocation2 + $0x4c] sm:$0xf]
    %v74 = vld [vmem:[#allocation2 + $0x50] sm:$0x1]
    %v75 = vunpack.c.l.bf16 %v74
    %v76 = vpack.c.bf16 %v57, %v57
    %v77 = vperm.slane %v75, 0
    %v94 = vunpack.c.l.b16 %v58
    %v95 = vunpack.c.l.b16 %v59
    %v96 = vunpack.c.l.b16 %v60
    %v97 = vunpack.c.l.b16 %v61
    %v98 = vunpack.c.l.b16 %v62
    %v99 = vunpack.c.l.b16 %v63
    %v100 = vunpack.c.l.b16 %v64
    %v101 = vunpack.c.l.b16 %v65
    %v102 = vunpack.c.l.b16 %v66
    %v103 = vunpack.c.l.b16 %v67
    %v104 = vunpack.c.l.b16 %v68
    %v105 = vunpack.c.l.b16 %v69
    %v106 = vunpack.c.l.b16 %v70
    %v107 = vunpack.c.l.b16 %v71
    %v108 = vunpack.c.l.b16 %v72
    %v109 = vunpack.c.l.b16 %v73
    %v110 = vpack.c.b16 %v95, %v94
    %v111 = vpack.c.b16 %v97, %v96
    %v112 = vpack.c.b16 %v99, %v98
    %v113 = vpack.c.b16 %v101, %v100
    %v114 = vpack.c.b16 %v103, %v102
    %v115 = vpack.c.b16 %v105, %v104
    %v116 = vpack.c.b16 %v107, %v106
    %v117 = vpack.c.b16 %v109, %v108
    %126 = vmatpush.bf16.msra.mxu0 %v117
    %127 = vmatpush.bf16.msra.mxu0 %v116
    %128 = vmatpush.bf16.msra.mxu0 %v115
    %129 = vmatpush.bf16.msra.mxu0 %v114
    %130 = vmatpush.bf16.msra.mxu0 %v113
    %131 = vmatpush.bf16.msra.mxu0 %v112
    %132 = vmatpush.bf16.msra.mxu0 %v111
    %133 = vmatpush.bf16.msra.mxu0 %v110
    %134 = vmatmul.bf16.gmra.mxu0 %v76
    %v135 = vpop.f32.mrf.mxu0
    %v136 = vadd.f32 %v77, %v135
    %v137 = vpop.f32.mrf.mxu0
    %138 = vdwg.mxu0
    %v139 = vmax.f32 %v136, 0.0
    %v140 = vld [vmem:[#allocation2 + $0x58] sm:$0x1]
    %v141 = vld [vmem:[#allocation2 + $0x60] sm:$0x1]
    %v142 = vunpack.c.l.bf16 %v141
    %v143 = vpack.c.bf16 %v139, %v139
    %145 = vset.pattern.permute.xlu0 0
    %146 = vperm.xlu0 %145, %v142
    %v147 = vpop.permute.xlu0 %146
    %149 = vmatpush.bf16.xpose.msra.mxu0 0
    %150 = vmatpush.bf16.xpose.msra.mxu0 0
    %151 = vmatpush.bf16.xpose.msra.mxu0 0
    %152 = vmatpush.bf16.xpose.msra.mxu0 0
    %153 = vmatpush.bf16.xpose.msra.mxu0 0
    %154 = vmatpush.bf16.xpose.msra.mxu0 0
    %155 = vmatpush.bf16.xpose.msra.mxu0 0
    %156 = vmatpush.bf16.xpose.msra.mxu0 %v143
    %157 = vmatmul.bf16.gmra.mxu0 %v140
    %v158 = vpop.f32.mrf.mxu0
    %v159 = vadd.f32 %v147, %v158
    %v160 = vpop.f32.mrf.mxu0
    %161 = vdwg.mxu0
    %vm162 = vcmask 58368
    %163 = vst.msk [vmem:[%s2] sm:$0x3] %vm162, %v159
    // Predicated region
    $region14: #{forward.1} parent=1 // pred_check
      _
    $region15: #{forward.1} parent=1 // pred_check_branch
      %165 = sbr.rel (0) target = $region17
    $region16: #{forward.1} parent=1 // pred_region
      _
    $region17: #{forward.1} parent=1 // pred_fallthru
      _
    // Predicated region
    $region18: #{forward.1} parent=1 // pred_check
      _
    $region19: #{forward.1} parent=1 // pred_check_branch
      %167 = sbr.rel (0) target = $region21
    $region20: #{forward.1} parent=1 // pred_region
      _
    $region21: #{forward.1} parent=1 // pred_fallthru
      _
    %168 = vsyncpa [#allocation3], 1

</llo_original>
